<compile_context>
chip_gen: v6e
topology: v6e:2x2x1
jax: 0.10.0
libtpu: 0.0.40
codegen_flags: <defaults>
</compile_context>

<pallas_src>
import jax
import jax.numpy as jnp
from jax.experimental import pallas as pl
from jax.experimental.pallas import tpu as pltpu


# --------------------------------------------------------------------------
# Kernel: elementwise branch-select rescale (same expression as PyTorch)
# --------------------------------------------------------------------------
def _rescale_kernel(coef_ref, x_ref, o_ref):
    # coef_ref: (3,) f32 in SMEM = (r, beta, le); x_ref/o_ref: (block_rows, lane)
    r = coef_ref[0]
    beta = coef_ref[1]
    le = coef_ref[2]
    x = x_ref[...].astype(jnp.float32)
    out = le * x * r + (1.0 - le) * (1.0 - (1.0 - x) * beta)
    o_ref[...] = out.astype(o_ref.dtype)


# --------------------------------------------------------------------------
# Per-chip-generation tuning
# --------------------------------------------------------------------------
def _device_tuning():
    """Returns (tile_bytes, vmem_limit_bytes, use_core_parallel)."""
    kind = ""
    try:
        kind = jax.devices()[0].device_kind.lower()
    except Exception:
        pass
    if ("v7" in kind) or ("tpu7" in kind) or ("7x" in kind):
        # 2 TensorCores, 64 MiB VMEM/TC, ~3.2 TB/s per TC: large tiles so the
        # fixed ~0.35 us/step overhead stays small; 8 MiB tile -> 32 MiB
        # double-buffered in+out footprint, within a 48 MiB scoped limit.
        return 8 * 1024 * 1024, 48 * 1024 * 1024, True
    if ("v6" in kind) or ("trillium" in kind):
        # 1 TC, 128 MiB VMEM: 4 MiB tiles (~86% of HBM roofline measured).
        return 4 * 1024 * 1024, 64 * 1024 * 1024, False
    # v5e / v5p / v4 / unknown: 2 MiB tiles; keep explicit 32 MiB VMEM limit
    # (v5e's scoped default is only 16 MiB).
    return 2 * 1024 * 1024, 32 * 1024 * 1024, False


# --------------------------------------------------------------------------
# Wrapper
# --------------------------------------------------------------------------
def rescale_prob_map(x: jax.Array, sparsity, *,
                     tile_bytes: int | None = None,
                     vmem_limit_bytes: int | None = None,
                     use_core_parallel: bool | None = None,
                     donate_input: bool = False) -> jax.Array:
    """x: probability map (any shape, float dtype); sparsity: scalar."""
    d_tile, d_vmem, d_core = _device_tuning()
    tile_bytes = d_tile if tile_bytes is None else tile_bytes
    vmem_limit_bytes = d_vmem if vmem_limit_bytes is None else vmem_limit_bytes
    use_core_parallel = d_core if use_core_parallel is None else use_core_parallel

    orig_shape = x.shape
    dtype = x.dtype
    n = x.size
    itemsize = x.dtype.itemsize

    # ---- global mean (f32 accumulation) + branch coefficients ----
    xbar = jnp.mean(x, dtype=jnp.float32)
    s = jnp.asarray(sparsity, jnp.float32)
    r = s / xbar
    beta = (1.0 - s) / (1.0 - xbar)      # no xbar==0/1 guards: matches PyTorch
    le = (r <= 1.0).astype(jnp.float32)
    coef = jnp.stack([r, beta, le])      # (3,) f32 -> SMEM

    # ---- lane-dense slab (rows, lane); avoid padding whenever possible ----
    lane = next((c for c in (1024, 512, 256, 128) if n % c == 0), 1024)
    rows = pl.cdiv(n, lane)
    pad = rows * lane - n                # < lane elements; 0 for aligned sizes
    xflat = x.reshape(-1)
    if pad:
        xflat = jnp.pad(xflat, (0, pad))
    x2d = xflat.reshape(rows, lane)

    # Tile rows: multiple of 32 (covers f32/bf16/int8 sublane packing); a block
    # equal to the full rows extent is always a legal block shape.
    cap = max(32, (tile_bytes // (lane * itemsize)) // 32 * 32)
    block_rows = rows if rows <= cap else cap
    grid = pl.cdiv(rows, block_rows)     # Pallas masks the partial last block

    def _call(semantics):
        return pl.pallas_call(
            _rescale_kernel,
            out_shape=jax.ShapeDtypeStruct((rows, lane), dtype),
            grid_spec=pltpu.PrefetchScalarGridSpec(
                num_scalar_prefetch=0,
                grid=(grid,),
                in_specs=[
                    # (r, beta, le) as f32 scalars resident in SMEM.
                    pl.BlockSpec(memory_space=pltpu.MemorySpace.SMEM),
                    pl.BlockSpec((block_rows, lane), lambda i: (i, 0)),
                ],
                out_specs=pl.BlockSpec((block_rows, lane), lambda i: (i, 0)),
            ),
            compiler_params=pltpu.CompilerParams(
                dimension_semantics=(semantics,),
                vmem_limit_bytes=vmem_limit_bytes),
            # Optional buffer reuse: input index 1 is x2d (index 0 is coef).
            # Block i is read before block i is written, so aliasing is safe.
            input_output_aliases=({1: 0} if donate_input else {}),
        )(coef, x2d)

    if use_core_parallel:
        # v7x: split the 1-D grid across both TensorCores (up to ~2x HBM BW).
        try:
            out2d = _call(pltpu.CORE_PARALLEL)
        except Exception:
            out2d = _call(pltpu.PARALLEL)
    else:
        out2d = _call(pltpu.PARALLEL)

    out_flat = out2d.reshape(-1)
    if pad:
        out_flat = out_flat[:n]          # skipped entirely for aligned sizes
    return out_flat.reshape(orig_shape)


# --------------------------------------------------------------------------
# Reference (pure JAX, same expression as the PyTorch module)
# --------------------------------------------------------------------------
def rescale_prob_map_ref(x, sparsity):
    xf = x.astype(jnp.float32)
    xbar = jnp.mean(xf)
    s = jnp.float32(sparsity)
    r = s / xbar
    beta = (1.0 - s) / (1.0 - xbar)
    le = (r <= 1.0).astype(jnp.float32)
    return le * xf * r + (1.0 - le) * (1.0 - (1.0 - xf) * beta)


if __name__ == "__main__":
    key = jax.random.PRNGKey(0)
    B, C, H, W = 2, 4, 16, 16
    x = jax.random.uniform(key, (B, C, H, W), dtype=jnp.float32,
                           minval=0.05, maxval=0.95)

    # Case 1: sparsity below mean -> r <= 1 branch
    s_lo = jnp.float32(0.25)
    out = jax.block_until_ready(rescale_prob_map(x, s_lo))
    assert out.shape == x.shape and out.dtype == x.dtype
    assert jnp.allclose(out, rescale_prob_map_ref(x, s_lo),
                        atol=1e-5, rtol=1e-5), "mismatch (r<=1 branch)"

    # Case 2: sparsity above mean -> r > 1 (beta) branch
    s_hi = jnp.float32(0.9)
    out2 = jax.block_until_ready(rescale_prob_map(x, s_hi))
    assert jnp.allclose(out2, rescale_prob_map_ref(x, s_hi),
                        atol=1e-5, rtol=1e-5), "mismatch (r>1 branch)"

    # Case 3: awkward (non-lane-aligned) shape -> minimal (<lane) pad path
    x_odd = jax.random.uniform(jax.random.PRNGKey(1), (3, 5, 7, 9),
                               dtype=jnp.float32, minval=0.05, maxval=0.95)
    out3 = jax.block_until_ready(rescale_prob_map(x_odd, s_lo))
    assert out3.shape == x_odd.shape
    assert jnp.allclose(out3, rescale_prob_map_ref(x_odd, s_lo),
                        atol=1e-5, rtol=1e-5), "mismatch (padded path)"

    # Case 4: multi-block grid with a masked partial last block (no row padding)
    x_big = jax.random.uniform(jax.random.PRNGKey(2), (2, 4, 96, 96),
                               dtype=jnp.float32, minval=0.05, maxval=0.95)
    out4 = jax.block_until_ready(
        rescale_prob_map(x_big, s_lo, tile_bytes=128 * 1024))
    assert jnp.allclose(out4, rescale_prob_map_ref(x_big, s_lo),
                        atol=1e-5, rtol=1e-5), "mismatch (multi-block path)"

    # Case 5: bf16 I/O stays bf16 end-to-end (HBM traffic halved)
    x_bf16 = jax.random.uniform(jax.random.PRNGKey(3), (4, 8, 32, 32),
                                dtype=jnp.float32, minval=0.05,
                                maxval=0.95).astype(jnp.bfloat16)
    out5 = jax.block_until_ready(rescale_prob_map(x_bf16, s_lo))
    assert out5.dtype == jnp.bfloat16
    assert jnp.allclose(out5.astype(jnp.float32), rescale_prob_map_ref(x_bf16, s_lo),
                        atol=1e-2, rtol=1e-2), "mismatch (bf16 path)"

    print("KERNEL_OK")
</pallas_src>

<mosaic_0001>
module attributes {stable_mosaic.version = 11 : i64} {
  func.func @_rescale_kernel(%arg0: i32, %arg1: memref<3xf32, #tpu.memory_space<smem>>, %arg2: memref<2x1024xf32, #tpu.memory_space<vmem>>, %arg3: memref<2x1024xf32, #tpu.memory_space<vmem>>) attributes {dimension_semantics = [#tpu.dimension_semantics<parallel>], iteration_bounds = array<i64: 1>, scalar_prefetch = 0 : i64, scratch_operands = 0 : i64, tpu.core_type = #tpu.core_type<tc>, window_params = [{transform_indices = @transform_0, window_bounds = array<i64: 3>}, {transform_indices = @transform_1, window_bounds = array<i64: 2, 1024>}, {transform_indices = @transform_2, window_bounds = array<i64: 2, 1024>}]} {
    %c0 = arith.constant 0 : index
    %0 = memref.load %arg1[%c0] : memref<3xf32, #tpu.memory_space<smem>>
    %c1 = arith.constant 1 : index
    %1 = memref.load %arg1[%c1] : memref<3xf32, #tpu.memory_space<smem>>
    %c2 = arith.constant 2 : index
    %2 = memref.load %arg1[%c2] : memref<3xf32, #tpu.memory_space<smem>>
    %c0_0 = arith.constant 0 : index
    %c0_1 = arith.constant 0 : index
    %3 = vector.load %arg2[%c0_0, %c0_1] : memref<2x1024xf32, #tpu.memory_space<vmem>>, vector<2x1024xf32>
    %4 = vector.broadcast %2 : f32 to vector<2x1024xf32>
    %5 = arith.mulf %4, %3 : vector<2x1024xf32>
    %6 = vector.broadcast %0 : f32 to vector<2x1024xf32>
    %7 = arith.mulf %5, %6 : vector<2x1024xf32>
    %cst = arith.constant 1.000000e+00 : f32
    %8 = arith.subf %cst, %2 : f32
    %cst_2 = arith.constant 1.000000e+00 : f32
    %9 = vector.broadcast %cst_2 : f32 to vector<2x1024xf32>
    %10 = arith.subf %9, %3 : vector<2x1024xf32>
    %11 = vector.broadcast %1 : f32 to vector<2x1024xf32>
    %12 = arith.mulf %10, %11 : vector<2x1024xf32>
    %cst_3 = arith.constant 1.000000e+00 : f32
    %13 = vector.broadcast %cst_3 : f32 to vector<2x1024xf32>
    %14 = arith.subf %13, %12 : vector<2x1024xf32>
    %15 = vector.broadcast %8 : f32 to vector<2x1024xf32>
    %16 = arith.mulf %15, %14 : vector<2x1024xf32>
    %17 = arith.addf %7, %16 : vector<2x1024xf32>
    %c0_4 = arith.constant 0 : index
    %c0_5 = arith.constant 0 : index
    %18 = vector.load %arg3[%c0_4, %c0_5] : memref<2x1024xf32, #tpu.memory_space<vmem>>, vector<2x1024xf32>
    tpu.vector_store %arg3[%c0_4, %c0_5], %17 {strides = array<i32>} : memref<2x1024xf32, #tpu.memory_space<vmem>>, vector<2x1024xf32>,
    return
  }
  func.func @transform_0(%arg0: i32) -> i32 {
    %c0_i32 = arith.constant 0 : i32
    %c0_i32_0 = arith.constant 0 : i32
    return %c0_i32 : i32
  }
  func.func @transform_1(%arg0: i32) -> (i32, i32) {
    %c0_i32 = arith.constant 0 : i32
    %c0_i32_0 = arith.constant 0 : i32
    return %arg0, %c0_i32 : i32, i32
  }
  func.func @transform_2(%arg0: i32) -> (i32, i32) {
    %c0_i32 = arith.constant 0 : i32
    %c0_i32_0 = arith.constant 0 : i32
    return %arg0, %c0_i32 : i32, i32
  }
}

</mosaic_0001>

<llo_original>
// kernel: tpu_custom_call.1
$region0: #{tpu_custom_call.1}
  #allocation0 [shape = 'u32[]', space=smem, size = 0x4, offset = 0x4, fixed_abs, tag = 'smem constant byte address 0x4 - core index']
  #allocation1 [shape = 'u32[144,128]{1,0:T(1,128)}', space=vmem, size = 0x12000, scoped, tag = 'internal scratch']
  %s0 = inlined_call_operand.hbm [shape: f32[3], index: 0, kind: input, shape index: {}]
  %s1 = inlined_call_operand.hbm [shape: f32[2,1024], index: 1, kind: input, shape index: {}]
  %s2 = inlined_call_operand.hbm [shape: f32[2,1024], index: 2, kind: output, shape index: {}]
  %s3 = sld [smem:[#allocation0]]
  $region26: #{tpu_custom_call.1} parent=0
    _
  %s5 = ssub.s32 1, %s3
  %s6 = scalar_select 0, %s5, %s3
  $region1: #{tpu_custom_call.1} parent=0
    #allocation2 [shape = 'u8[512]{0}', space=smem, size = 0x200, scoped, tag = 'input window, operand 0, single buffered']
    #allocation3 [shape = 's32[1]{0}', space=sflag, size = 0x4, scoped, tag = 'scoped memory for tpu_custom_call.1']
    #allocation4 [shape = 's32[1]{0}', space=sflag, size = 0x4, scoped, tag = 'scoped memory for tpu_custom_call.1']
    #allocation5 [shape = 's32[1]{0}', space=sflag, size = 0x4, scoped, tag = 'scoped memory for tpu_custom_call.1']
    #allocation6 [shape = 'u8[8192]{0}', space=vmem, size = 0x2000, scoped, tag = 'input window, operand 1, single buffered']
    #allocation7 [shape = 'u8[8192]{0}', space=vmem, size = 0x2000, scoped, tag = 'output window, operand 0, single buffered']
    %7 = vsyncpa [#allocation5], 0
    %8 = vsyncpa [#allocation3], 0
    %9 = vsyncpa [#allocation4], 0
    // Predicated region
    $region2: #{tpu_custom_call.1} parent=1 // pred_check
      _
    $region3: #{tpu_custom_call.1} parent=1 // pred_check_branch
      %11 = sbr.rel (0) target = $region5
    $region4: #{tpu_custom_call.1} parent=1 // pred_region
      %s13 = ssub.s32 16, 16
      %14 = vsyncadd [#allocation5], %s13
      %17 = dma.hbm_to_smem %s0, 16, [#allocation2], [#allocation5]
    $region5: #{tpu_custom_call.1} parent=1 // pred_fallthru
      _
    // Predicated region
    $region6: #{tpu_custom_call.1} parent=1 // pred_check
      _
    $region7: #{tpu_custom_call.1} parent=1 // pred_check_branch
      %19 = sbr.rel (0) target = $region9
    $region8: #{tpu_custom_call.1} parent=1 // pred_region
      %s21 = ssub.s32 256, 256
      %22 = vsyncadd [#allocation3], %s21
      %s24 = sshll.u32 [#allocation6], 4
      %s25 = int_to_ptr.vmem [resolvable:$true] %s24
      %27 = dma.hbm_to_vmem [thread:$0]  %s1, 256, %s25, [#allocation3]
    $region9: #{tpu_custom_call.1} parent=1 // pred_fallthru
      _
    // Predicated region
    $region10: #{tpu_custom_call.1} parent=1 // pred_check
      _
    $region11: #{tpu_custom_call.1} parent=1 // pred_check_branch
      %29 = sbr.rel (0) target = $region13
    $region12: #{tpu_custom_call.1} parent=1 // pred_region
      %30 = dma.done [#allocation5], 16
    $region13: #{tpu_custom_call.1} parent=1 // pred_fallthru
      _
    // Predicated region
    $region14: #{tpu_custom_call.1} parent=1 // pred_check
      _
    $region15: #{tpu_custom_call.1} parent=1 // pred_check_branch
      %32 = sbr.rel (0) target = $region17
    $region16: #{tpu_custom_call.1} parent=1 // pred_region
      %33 = dma.done [#allocation3], 256
    $region17: #{tpu_custom_call.1} parent=1 // pred_fallthru
      _
    %34 = sfence
    %s35 = sld [smem:[#allocation2]]
    %s36 = sld [smem:[#allocation2 + $0x1]]
    %s37 = sld [smem:[#allocation2 + $0x2]]
    %v38 = vld [vmem:[#allocation6] sm:$0xff]
    %v39 = vld [vmem:[#allocation6 + $0x8] sm:$0xff]
    %v40 = vstv %s37
    %v41 = vmul.f32 %v40, %v38
    %v42 = vmul.f32 %v40, %v39
    %v43 = vstv %s35
    %v44 = vmul.f32 %v41, %v43
    %v45 = vmul.f32 %v42, %v43
    %s46 = ssub.f32 1.0, %s37
    %v47 = vsub.f32 1.0, %v38
    %v48 = vsub.f32 1.0, %v39
    %v49 = vstv %s36
    %v50 = vmul.f32 %v47, %v49
    %v51 = vmul.f32 %v48, %v49
    %v52 = vsub.f32 1.0, %v50
    %v53 = vsub.f32 1.0, %v51
    %v54 = vstv %s46
    %v55 = vmul.f32 %v54, %v52
    %v56 = vmul.f32 %v54, %v53
    %v57 = vadd.f32 %v44, %v55
    %v58 = vadd.f32 %v45, %v56
    %59 = vst [vmem:[#allocation7] sm:$0xff] %v57
    %60 = vst [vmem:[#allocation7 + $0x8] sm:$0xff] %v58
    // Predicated region
    $region18: #{tpu_custom_call.1} parent=1 // pred_check
      _
    $region19: #{tpu_custom_call.1} parent=1 // pred_check_branch
      %62 = sbr.rel (0) target = $region21
    $region20: #{tpu_custom_call.1} parent=1 // pred_region
      %s64 = ssub.s32 256, 256
      %65 = vsyncadd [#allocation4], %s64
      %s67 = sshll.u32 [#allocation7], 4
      %s68 = int_to_ptr.vmem [resolvable:$true] %s67
      %70 = dma.vmem_to_hbm [thread:$0]  %s68, 256, %s2, [#allocation4]
    $region21: #{tpu_custom_call.1} parent=1 // pred_fallthru
      _
    // Predicated region
    $region22: #{tpu_custom_call.1} parent=1 // pred_check
      _
    $region23: #{tpu_custom_call.1} parent=1 // pred_check_branch
      %72 = sbr.rel (0) target = $region25
    $region24: #{tpu_custom_call.1} parent=1 // pred_region
      %73 = dma.done [#allocation4], 256
    $region25: #{tpu_custom_call.1} parent=1 // pred_fallthru
      _
    %74 = vsyncpa [#allocation3], 1
    %75 = vsyncpa [#allocation4], 1
    %76 = vsyncpa [#allocation5], 1

</llo_original>
